<compile_context>
chip_gen: v6e
topology: v6e:2x2x1
jax: 0.10.0
libtpu: 0.0.40
codegen_flags: <defaults>
</compile_context>

<pallas_src>
import jax
import jax.numpy as jnp
from jax import lax
from jax.experimental import pallas as pl
from jax.experimental.pallas import tpu as pltpu


_VMEM_TILE_BUDGET = 20 * 1024 * 1024  # double-buffered x/out tiles; v7x-safe


def _round_up(x, m):
    return ((x + m - 1) // m) * m


def _choose_batch_tile(N, C, O, x_bytes):
    """Pick the batch tile (rows per grid step)."""
    # Sublane multiple for the streamed x dtype (f32: 8, bf16: 16, int8/fp8: 32).
    mult = 8 if x_bytes == 4 else (16 if x_bytes == 2 else 32)
    # Bytes of double-buffered x tile + double-buffered f32 output tile per row.
    per_row = 2 * C * x_bytes + 2 * O * 4
    tn = max(mult, _VMEM_TILE_BUDGET // per_row)   # fit the VMEM budget
    tn = min(tn, 8192)                             # 8192 already amortizes ~0.35us/step
    # Keep >= ~4 grid steps when the batch is large enough (so the "parallel"
    # axis can shard across TensorCores on v7x and the pipeline overlaps), but
    # never shrink the tile below 4096 rows just for that.
    tn = min(tn, max(pl.cdiv(N, 4), 4096))
    tn = max(mult, min(tn, N))
    return _round_up(tn, mult)


def _head_kernel(x_ref, w_ref, b_ref, o_ref):
    # x_ref: (TN, C) in the incoming dtype (f32 or bf16), streamed per step.
    # w_ref: (C, O)  same dtype, VMEM-resident (constant index_map).
    # b_ref: (1, O)  float32,    VMEM-resident.
    # o_ref: (TN, O) float32, unpadded lane-exact output tile.
    acc = jnp.dot(x_ref[...], w_ref[...], preferred_element_type=jnp.float32)
    o_ref[...] = (acc + b_ref[...]).astype(o_ref.dtype)


def temporal_regression_head_forward(x, weight, bias, num_joints):
    """Forward pass of TemporalRegressionHead.

    Args:
      x:      (N, C, 1) float32 or bfloat16 -- PyTorch NCL conv1d input. x is
              streamed in its own dtype (no wrapper-side cast/copy).
      weight: (O, C) float32 -- Conv1d weight with the kernel dim squeezed
              (PyTorch weight is (O, C, 1)).
      bias:   (O,) float32
      num_joints: K, with O == K * 3.

    Returns:
      (N, K, 3) float32
    """
    assert x.ndim == 3 and x.shape[2] == 1, f"Invalid shape {x.shape}"
    N, C, _ = x.shape
    O = weight.shape[0]
    assert O == num_joints * 3
    assert weight.shape == (O, C)
    assert bias.shape == (O,)

    x_bytes = jnp.dtype(x.dtype).itemsize
    tn = _choose_batch_tile(N, C, O, x_bytes)
    grid_n = pl.cdiv(N, tn)   # non-divisible N handled by boundary masking

    # (N, C, 1) -> (N, C): contiguous reshape, no copy, no dtype cast.
    x2d = x.reshape(N, C)

    # One-time tiny parameter transforms: transpose the weight to (C, O) so the
    # kernel is a plain row-major matmul; match x's streaming dtype.
    w_t = weight.T.astype(x.dtype)                   # (C, O)
    b2d = bias.astype(jnp.float32).reshape(1, O)     # (1, O)

    # Explicit scoped-VMEM limit: actual need + headroom, >= 32 MiB (fixes
    # v5e's 16 MiB default), capped well under v7x's 64 MiB physical VMEM.
    vmem_need = (2 * tn * C * x_bytes                # x tile, double-buffered
                 + 2 * tn * O * 4                    # f32 out tile, double-buffered
                 + 2 * (C * O * x_bytes + O * 4))    # resident weight + bias
    vmem_limit = int(min(48 * 1024 * 1024,
                         max(32 * 1024 * 1024, vmem_need + 4 * 1024 * 1024)))

    out = pl.pallas_call(
        _head_kernel,
        out_shape=jax.ShapeDtypeStruct((N, O), jnp.float32),
        grid_spec=pl.GridSpec(
            grid=(grid_n,),
            in_specs=[
                pl.BlockSpec((tn, C), lambda i: (i, 0)),   # x: streamed batch tiles
                pl.BlockSpec((C, O), lambda i: (0, 0)),    # weight: VMEM-resident
                pl.BlockSpec((1, O), lambda i: (0, 0)),    # bias: VMEM-resident
            ],
            out_specs=pl.BlockSpec((tn, O), lambda i: (i, 0)),
        ),
        compiler_params=pltpu.CompilerParams(
            dimension_semantics=("parallel",),
            vmem_limit_bytes=vmem_limit,
        ),
    )(x2d, w_t, b2d)

    # (N, O) -> (N, K, 3): contiguous reshape, free.
    return out.reshape(N, num_joints, 3)


if __name__ == "__main__":
    # --- Small, module-consistent shapes -------------------------------------
    batch = 2
    in_channels = 32
    num_joints = 17            # standard Human3.6M joint count
    out_channels = num_joints * 3

    key = jax.random.PRNGKey(0)
    kx, kw, kx3 = jax.random.split(key, 3)

    # Input features: (N, C, 1), as asserted by the PyTorch forward.
    x = jax.random.normal(kx, (batch, in_channels, 1), dtype=jnp.float32)

    # Deterministic init matching init_weights(): normal(mean=0, std=0.001), bias=0.
    weight = 0.001 * jax.random.normal(
        kw, (out_channels, in_channels), dtype=jnp.float32
    )
    bias = jnp.zeros((out_channels,), dtype=jnp.float32)

    def reference(x_, w_, b_):
        y = jnp.dot(x_[:, :, 0], w_.T, precision=lax.Precision.HIGHEST) + b_
        return y.reshape(x_.shape[0], num_joints, 3)

    # f32 path.
    ref = reference(x, weight, bias)
    out = temporal_regression_head_forward(x, weight, bias, num_joints)
    out = jax.block_until_ready(out)
    assert out.shape == (batch, num_joints, 3)
    assert jnp.allclose(out, ref, atol=1e-5, rtol=1e-5)

    # bf16 pass-through path: the producer already supplies bf16 features in
    # HBM; the wrapper performs no cast/copy of x (weight is cast to bf16,
    # accumulation stays f32). Looser tolerance vs the f32 reference.
    x_bf16 = x.astype(jnp.bfloat16)
    out_bf16 = temporal_regression_head_forward(x_bf16, weight, bias, num_joints)
    out_bf16 = jax.block_until_ready(out_bf16)
    assert out_bf16.shape == (batch, num_joints, 3)
    assert jnp.allclose(out_bf16, ref, atol=1e-3, rtol=2e-2)

    # Larger, non-divisible batch with realistic C=1024 (VideoPose3D trunk
    # width): exercises multi-step grid, VMEM-budgeted tiling and boundary
    # masking of the ragged last tile.
    batch3, in_channels3 = 10000, 1024
    x3 = jax.random.normal(kx3, (batch3, in_channels3, 1), dtype=jnp.float32)
    weight3 = 0.001 * jax.random.normal(
        kw, (out_channels, in_channels3), dtype=jnp.float32
    )
    ref3 = reference(x3, weight3, bias)
    out3 = temporal_regression_head_forward(x3, weight3, bias, num_joints)
    out3 = jax.block_until_ready(out3)
    assert out3.shape == (batch3, num_joints, 3)
    assert jnp.allclose(out3, ref3, atol=1e-4, rtol=1e-4)

    print("KERNEL_OK")
</pallas_src>

<mosaic_0001>
module attributes {stable_mosaic.version = 11 : i64} {
  func.func @_head_kernel(%arg0: i32, %arg1: memref<8x32xf32, #tpu.memory_space<vmem>>, %arg2: memref<32x51xf32, #tpu.memory_space<vmem>>, %arg3: memref<1x51xf32, #tpu.memory_space<vmem>>, %arg4: memref<8x51xf32, #tpu.memory_space<vmem>>) attributes {dimension_semantics = [#tpu.dimension_semantics<parallel>], iteration_bounds = array<i64: 1>, scalar_prefetch = 0 : i64, scratch_operands = 0 : i64, tpu.core_type = #tpu.core_type<tc>, window_params = [{transform_indices = @transform_0, window_bounds = array<i64: 8, 32>}, {pipeline_mode = #tpu.pipeline_mode<synchronous>, transform_indices = @transform_1, window_bounds = array<i64: 32, 51>}, {pipeline_mode = #tpu.pipeline_mode<synchronous>, transform_indices = @transform_2, window_bounds = array<i64: 1, 51>}, {transform_indices = @transform_3, window_bounds = array<i64: 8, 51>}]} {
    %c0 = arith.constant 0 : index
    %c0_0 = arith.constant 0 : index
    %0 = vector.load %arg1[%c0, %c0_0] : memref<8x32xf32, #tpu.memory_space<vmem>>, vector<8x32xf32>
    %c0_1 = arith.constant 0 : index
    %c0_2 = arith.constant 0 : index
    %1 = vector.load %arg2[%c0_1, %c0_2] : memref<32x51xf32, #tpu.memory_space<vmem>>, vector<32x51xf32>
    %cst = arith.constant dense<0.000000e+00> : vector<8x51xf32>
    %2 = tpu.matmul %0, %1, %cst {dimension_numbers = #tpu.dot_dimension_numbers<[1], [0], [0], [1], [0, 0, 1, 1], [], []>} : vector<8x32xf32>, vector<32x51xf32>, vector<8x51xf32> -> vector<8x51xf32>
    %c0_3 = arith.constant 0 : index
    %c0_4 = arith.constant 0 : index
    %3 = vector.load %arg3[%c0_3, %c0_4] : memref<1x51xf32, #tpu.memory_space<vmem>>, vector<1x51xf32>
    %4 = vector.broadcast %3 : vector<1x51xf32> to vector<8x51xf32>
    %5 = arith.addf %2, %4 : vector<8x51xf32>
    %c0_5 = arith.constant 0 : index
    %c0_6 = arith.constant 0 : index
    %6 = vector.load %arg4[%c0_5, %c0_6] : memref<8x51xf32, #tpu.memory_space<vmem>>, vector<8x51xf32>
    tpu.vector_store %arg4[%c0_5, %c0_6], %5 {strides = array<i32>} : memref<8x51xf32, #tpu.memory_space<vmem>>, vector<8x51xf32>,
    return
  }
  func.func @transform_0(%arg0: i32) -> (i32, i32) {
    %c0_i32 = arith.constant 0 : i32
    %c0_i32_0 = arith.constant 0 : i32
    return %arg0, %c0_i32 : i32, i32
  }
  func.func @transform_1(%arg0: i32) -> (i32, i32) {
    %c0_i32 = arith.constant 0 : i32
    %c0_i32_0 = arith.constant 0 : i32
    %c0_i32_1 = arith.constant 0 : i32
    return %c0_i32, %c0_i32_0 : i32, i32
  }
  func.func @transform_2(%arg0: i32) -> (i32, i32) {
    %c0_i32 = arith.constant 0 : i32
    %c0_i32_0 = arith.constant 0 : i32
    %c0_i32_1 = arith.constant 0 : i32
    return %c0_i32, %c0_i32_0 : i32, i32
  }
  func.func @transform_3(%arg0: i32) -> (i32, i32) {
    %c0_i32 = arith.constant 0 : i32
    %c0_i32_0 = arith.constant 0 : i32
    return %arg0, %c0_i32 : i32, i32
  }
}

</mosaic_0001>

<llo_original>
// kernel: tpu_custom_call.1
$region0: #{tpu_custom_call.1}
  #allocation0 [shape = 'u32[]', space=smem, size = 0x4, offset = 0x4, fixed_abs, tag = 'smem constant byte address 0x4 - core index']
  #allocation1 [shape = 'u32[144,128]{1,0:T(1,128)}', space=vmem, size = 0x12000, scoped, tag = 'internal scratch']
  %s0 = inlined_call_operand.hbm [shape: f32[2,32], index: 0, kind: input, shape index: {}]
  %s1 = inlined_call_operand.hbm [shape: f32[32,51], index: 1, kind: input, shape index: {}]
  %s2 = inlined_call_operand.vmem [shape: f32[1,51], index: 2, kind: input, shape index: {}]
  %s3 = inlined_call_operand.hbm [shape: f32[2,51], index: 3, kind: output, shape index: {}]
  %s4 = sld [smem:[#allocation0]]
  $region30: #{tpu_custom_call.1} parent=0
    _
  %s6 = ssub.s32 1, %s4
  %s7 = scalar_select 0, %s6, %s4
  $region1: #{tpu_custom_call.1} parent=0
    #allocation2 [shape = 'u8[4096]{0}', space=vmem, size = 0x1000, scoped, tag = 'input window, operand 0, single buffered']
    #allocation3 [shape = 's32[1]{0}', space=sflag, size = 0x4, scoped, tag = 'scoped memory for tpu_custom_call.1']
    #allocation4 [shape = 's32[1]{0}', space=sflag, size = 0x4, scoped, tag = 'scoped memory for tpu_custom_call.1']
    #allocation5 [shape = 'u8[16384]{0}', space=vmem, size = 0x4000, scoped, tag = 'input window, operand 1, single buffered']
    #allocation6 [shape = 's32[1]{0}', space=sflag, size = 0x4, scoped, tag = 'scoped memory for tpu_custom_call.1']
    #allocation7 [shape = 'u8[4096]{0}', space=vmem, size = 0x1000, scoped, tag = 'output window, operand 0, single buffered']
    %8 = vsyncpa [#allocation3], 0
    %9 = vsyncpa [#allocation6], 0
    %10 = vsyncpa [#allocation4], 0
    // Predicated region
    $region2: #{tpu_custom_call.1} parent=1 // pred_check
      _
    $region3: #{tpu_custom_call.1} parent=1 // pred_check_branch
      %12 = sbr.rel (0) target = $region5
    $region4: #{tpu_custom_call.1} parent=1 // pred_region
      %s14 = ssub.s32 128, 32
      %15 = vsyncadd [#allocation3], %s14
      %s16 = sshll.u32 [#allocation2], 4
      %s17 = int_to_ptr.vmem [resolvable:$true] %s16
      %22 = dma.hbm_to_vmem [thread:$0]  %s0, 32, %s17, [#allocation3], 32, 32, 2
    $region5: #{tpu_custom_call.1} parent=1 // pred_fallthru
      _
    // Predicated region
    $region6: #{tpu_custom_call.1} parent=1 // pred_check
      _
    $region7: #{tpu_custom_call.1} parent=1 // pred_check_branch
      %24 = sbr.rel (0) target = $region9
    $region8: #{tpu_custom_call.1} parent=1 // pred_region
      %s26 = ssub.s32 512, 512
      %27 = vsyncadd [#allocation6], %s26
      %s28 = sshll.u32 [#allocation5], 4
      %s29 = int_to_ptr.vmem [resolvable:$true] %s28
      %34 = dma.hbm_to_vmem [thread:$0]  %s1, 512, %s29, [#allocation6], 128, 128, 8
    $region9: #{tpu_custom_call.1} parent=1 // pred_fallthru
      _
    // Predicated region
    $region10: #{tpu_custom_call.1} parent=1 // pred_check
      _
    $region11: #{tpu_custom_call.1} parent=1 // pred_check_branch
      %36 = sbr.rel (0) target = $region13
    $region12: #{tpu_custom_call.1} parent=1 // pred_region
      _
    $region13: #{tpu_custom_call.1} parent=1 // pred_fallthru
      _
    // Predicated region
    $region14: #{tpu_custom_call.1} parent=1 // pred_check
      _
    $region15: #{tpu_custom_call.1} parent=1 // pred_check_branch
      %38 = sbr.rel (0) target = $region17
    $region16: #{tpu_custom_call.1} parent=1 // pred_region
      %39 = dma.done [#allocation3], 128
    $region17: #{tpu_custom_call.1} parent=1 // pred_fallthru
      _
    // Predicated region
    $region18: #{tpu_custom_call.1} parent=1 // pred_check
      _
    $region19: #{tpu_custom_call.1} parent=1 // pred_check_branch
      %41 = sbr.rel (0) target = $region21
    $region20: #{tpu_custom_call.1} parent=1 // pred_region
      %42 = dma.done [#allocation6], 512
    $region21: #{tpu_custom_call.1} parent=1 // pred_fallthru
      _
    %v43 = vld [vmem:[#allocation2] sm:$0xff]
    %v44 = vld [vmem:[#allocation5] sm:$0xff]
    %v45 = vld [vmem:[#allocation5 + $0x8] sm:$0xff]
    %v46 = vld [vmem:[#allocation5 + $0x10] sm:$0xff]
    %v47 = vld [vmem:[#allocation5 + $0x18] sm:$0xff]
    %v48 = vld [vmem:[%s2] sm:$0x1]
    %v50 = vlaneseq
    %v51 = vshrl.u32 %v50, 7
    %v52 = vsub.s32 0, %v51
    %v53 = vrot.slane %v48, %v52
    %vm55 = vcmask 261120
    %v57 = vsel %vm55, %v43, 0
    %59 = vmatprep.subr.mxu0 0.0
    %60 = vmatpush1.msra.mxu0 0.0
    %61 = vmatprep.subr.mxu0 0.0
    %62 = vmatpush1.msra.mxu0 0.0
    %63 = vmatprep.subr.mxu0 0.0
    %64 = vmatpush1.msra.mxu0 0.0
    %65 = vmatprep.subr.mxu0 0.0
    %66 = vmatpush1.msra.mxu0 0.0
    %67 = vmatprep.subr.mxu0 0.0
    %68 = vmatpush1.msra.mxu0 0.0
    %69 = vmatprep.subr.mxu0 0.0
    %70 = vmatpush1.msra.mxu0 0.0
    %71 = vmatprep.subr.mxu0 0.0
    %72 = vmatpush1.msra.mxu0 0.0
    %73 = vmatprep.subr.mxu0 0.0
    %74 = vmatpush1.msra.mxu0 0.0
    %75 = vmatprep.subr.mxu0 0.0
    %76 = vmatpush1.msra.mxu0 0.0
    %77 = vmatprep.subr.mxu0 0.0
    %78 = vmatpush1.msra.mxu0 0.0
    %79 = vmatprep.subr.mxu0 0.0
    %80 = vmatpush1.msra.mxu0 0.0
    %81 = vmatprep.subr.mxu0 0.0
    %82 = vmatpush1.msra.mxu0 0.0
    %83 = vmatprep.subr.mxu0 0.0
    %84 = vmatpush1.msra.mxu0 %v47
    %85 = vmatprep.subr.mxu0 0.0
    %86 = vmatpush1.msra.mxu0 %v46
    %87 = vmatprep.subr.mxu0 0.0
    %88 = vmatpush1.msra.mxu0 %v45
    %89 = vmatprep.subr.mxu0 0.0
    %90 = vmatpush1.msra.mxu0 %v44
    %91 = vmatprep.subr.mxu0 0.0
    %92 = vmatpush2.msra.mxu0 0.0
    %93 = vmatprep.subr.mxu0 0.0
    %94 = vmatpush2.msra.mxu0 0.0
    %95 = vmatprep.subr.mxu0 0.0
    %96 = vmatpush2.msra.mxu0 0.0
    %97 = vmatprep.subr.mxu0 0.0
    %98 = vmatpush2.msra.mxu0 0.0
    %99 = vmatprep.subr.mxu0 0.0
    %100 = vmatpush2.msra.mxu0 0.0
    %101 = vmatprep.subr.mxu0 0.0
    %102 = vmatpush2.msra.mxu0 0.0
    %103 = vmatprep.subr.mxu0 0.0
    %104 = vmatpush2.msra.mxu0 0.0
    %105 = vmatprep.subr.mxu0 0.0
    %106 = vmatpush2.msra.mxu0 0.0
    %107 = vmatprep.subr.mxu0 0.0
    %108 = vmatpush2.msra.mxu0 0.0
    %109 = vmatprep.subr.mxu0 0.0
    %110 = vmatpush2.msra.mxu0 0.0
    %111 = vmatprep.subr.mxu0 0.0
    %112 = vmatpush2.msra.mxu0 0.0
    %113 = vmatprep.subr.mxu0 0.0
    %114 = vmatpush2.msra.mxu0 0.0
    %115 = vmatprep.subr.mxu0 0.0
    %116 = vmatpush2.msra.mxu0 0.0
    %117 = vmatprep.subr.mxu0 0.0
    %118 = vmatpush2.msra.mxu0 0.0
    %119 = vmatprep.subr.mxu0 0.0
    %120 = vmatpush2.msra.mxu0 0.0
    %121 = vmatprep.subr.mxu0 0.0
    %122 = vmatpush2.msra.mxu0 0.0
    %123 = vmatprep.mubr.f32.mxu0 0.0
    %124 = vmatmul.mubr.f32.gmra.mxu0 %v57
    %v125 = vpop.f32.mrf.mxu0
    %v126 = vadd.f32 %v53, %v125
    %v127 = vpop.f32.mrf.mxu0
    %128 = vdwg.mxu0
    %vm129 = vcmask 416768
    %130 = vst.msk [vmem:[#allocation7] sm:$0xff] %vm129, %v126
    // Predicated region
    $region22: #{tpu_custom_call.1} parent=1 // pred_check
      _
    $region23: #{tpu_custom_call.1} parent=1 // pred_check_branch
      %132 = sbr.rel (0) target = $region25
    $region24: #{tpu_custom_call.1} parent=1 // pred_region
      %s134 = ssub.s32 128, 32
      %135 = vsyncadd [#allocation4], %s134
      %s136 = sshll.u32 [#allocation7], 4
      %s137 = int_to_ptr.vmem [resolvable:$true] %s136
      %142 = dma.vmem_to_hbm [thread:$0]  %s137, 32, %s3, [#allocation4], 32, 32, 2
    $region25: #{tpu_custom_call.1} parent=1 // pred_fallthru
      _
    // Predicated region
    $region26: #{tpu_custom_call.1} parent=1 // pred_check
      _
    $region27: #{tpu_custom_call.1} parent=1 // pred_check_branch
      %144 = sbr.rel (0) target = $region29
    $region28: #{tpu_custom_call.1} parent=1 // pred_region
      %145 = dma.done [#allocation4], 128
    $region29: #{tpu_custom_call.1} parent=1 // pred_fallthru
      _
    %146 = vsyncpa [#allocation3], 1
    %147 = vsyncpa [#allocation6], 1
    %148 = vsyncpa [#allocation4], 1

</llo_original>
